<compile_context>
chip_gen: v7x
topology: tpu7x:2x2x1
jax: 0.10.0
libtpu: 0.0.40
codegen_flags: <defaults>
</compile_context>

<pallas_src>
import functools
import math

import jax
import jax.numpy as jnp
from jax import lax
from jax.experimental import pallas as pl
from jax.experimental.pallas import tpu as pltpu


def _chip_generation():
    """Best-effort TPU generation detection; falls back to conservative."""
    try:
        kind = jax.devices()[0].device_kind.lower()
    except Exception:
        return "unknown"
    if "v7" in kind:
        return "v7x"
    if "v6" in kind:
        return "v6e"
    if "v5" in kind:
        return "v5e"
    return "unknown"


def _scalenorm_kernel(g_ref, x_ref, o_ref, *, inv_scale, inv_eps):
    # g_ref: SMEM scalar parameter (shape (1,))
    # x_ref/o_ref: (tile_rows, dim) VMEM tiles
    xf = x_ref[...].astype(jnp.float32)
    # sum of squares over lanes (XLU reduce), keepdim -> (tile_rows, 1)
    sumsq = jnp.sum(xf * xf, axis=-1, keepdims=True)
    # 1 / clamp(sqrt(sumsq) * dim**-0.5, eps) == min(rsqrt(sumsq) * sqrt(dim), 1/eps)
    # (at sumsq == 0: rsqrt -> inf, min picks 1/eps; x == 0 so out == 0)
    inv_norm = jnp.minimum(lax.rsqrt(sumsq) * inv_scale, inv_eps)
    # Fold the learned scalar g into the per-row factor (single broadcast mul).
    factor = inv_norm * g_ref[0]
    # Multiply in the input dtype; only the reduce above is in f32, so the f32
    # upcast does not need to stay live across the XLU reduce.
    o_ref[...] = (x_ref[...] * factor.astype(x_ref.dtype)).astype(o_ref.dtype)


def scale_norm(x, g, *, eps=1e-5):
    """ScaleNorm forward. x: (..., dim); g: (1,) scalar parameter."""
    dim = x.shape[-1]
    orig_shape = x.shape
    rows = 1
    for s in orig_shape[:-1]:
        rows *= s
    x2 = x.reshape(rows, dim)

    # --- per-chip tuning --------------------------------------------------
    chip = _chip_generation()
    if chip == "v7x":
        target_tile_bytes = 8 << 20   # ~3.2 TB/s per TC: big tiles amortize step overhead
        vmem_budget_bytes = 44 << 20
        vmem_limit_bytes = 48 << 20   # raise the 32 MiB scoped default (64 MiB physical)
        min_grid_steps = 2            # 2 TensorCores/chip: keep both busy via "parallel"
    elif chip == "v6e":
        target_tile_bytes = 4 << 20
        vmem_budget_bytes = 40 << 20
        vmem_limit_bytes = 48 << 20   # headroom under 128 MiB physical
        min_grid_steps = 1
    else:  # v5e / unknown: stay under the 16 MiB scoped default, no flag bump
        target_tile_bytes = 3 << 20
        vmem_budget_bytes = 13 << 20
        vmem_limit_bytes = None
        min_grid_steps = 1

    # --- tile sizing --------------------------------------------------------
    itemsize = jnp.dtype(x.dtype).itemsize
    # Sublane packing multiple: 8 for 4-byte, 16 for 2-byte, 32 for 1-byte dtypes.
    sub = max(8, 32 // max(itemsize, 1))

    # VMEM accounting: 2x double-buffered input + 2x double-buffered output
    # tiles in x.dtype, plus ~one transient f32 row's worth for the square.
    bytes_per_row_budget = dim * (4 * itemsize + 4)
    cap_budget = max(vmem_budget_bytes // bytes_per_row_budget, sub)
    cap_target = max(target_tile_bytes // (dim * itemsize), sub)
    tile_rows = min(cap_target, cap_budget)

    # Don't exceed what the (sublane-padded) array needs.
    tile_rows = min(tile_rows, ((rows + sub - 1) // sub) * sub)

    # On v7x, make sure there are >= 2 grid steps so "parallel" shards across
    # both TensorCores.
    if min_grid_steps > 1 and rows > sub:
        per_step = -(-rows // min_grid_steps)              # ceil div
        per_step = ((per_step + sub - 1) // sub) * sub
        tile_rows = min(tile_rows, per_step)

    tile_rows = max((tile_rows // sub) * sub, sub)

    grid = (pl.cdiv(rows, tile_rows),)   # ragged last block masked by Pallas

    kernel = functools.partial(
        _scalenorm_kernel,
        inv_scale=float(dim) ** 0.5,     # == 1 / (dim ** -0.5)
        inv_eps=1.0 / eps,
    )

    cp_kwargs = dict(dimension_semantics=("parallel",))
    if vmem_limit_bytes is not None:
        cp_kwargs["vmem_limit_bytes"] = vmem_limit_bytes

    out = pl.pallas_call(
        kernel,
        out_shape=jax.ShapeDtypeStruct((rows, dim), x.dtype),
        grid_spec=pltpu.PrefetchScalarGridSpec(
            num_scalar_prefetch=0,
            grid=grid,
            in_specs=[
                pl.BlockSpec(memory_space=pltpu.MemorySpace.SMEM),  # g (scalar)
                # If profiling ever shows exposed DMA at step boundaries, sweep
                # pipeline_mode=pl.Buffered(3) on this spec.
                pl.BlockSpec((tile_rows, dim), lambda i: (i, 0)),   # x tile
            ],
            out_specs=pl.BlockSpec((tile_rows, dim), lambda i: (i, 0)),
        ),
        compiler_params=pltpu.CompilerParams(**cp_kwargs),
    )(g, x2)

    return out.reshape(orig_shape)


def scale_norm_ref(x, g, *, eps=1e-5):
    dim = x.shape[-1]
    scale = dim ** (-0.5)
    norm = jnp.linalg.norm(x.astype(jnp.float32), axis=-1, keepdims=True) * scale
    norm = jnp.maximum(norm, eps)
    return (x.astype(jnp.float32) / norm * g[0]).astype(x.dtype)


if __name__ == "__main__":
    key = jax.random.PRNGKey(0)
    # Deterministic parameter init, as in nn.Parameter(torch.ones(1)).
    g = jnp.ones((1,), dtype=jnp.float32)

    # Primary case: lane-dense hidden dim (multiple of 128).
    B, S, D = 2, 8, 128
    x = jax.random.normal(key, (B, S, D), dtype=jnp.float32)
    out = jax.block_until_ready(scale_norm(x, g))
    ref = scale_norm_ref(x, g)
    assert out.shape == x.shape
    assert jnp.allclose(out, ref, atol=2e-5, rtol=1e-5), "mismatch vs reference (dense)"

    # Ragged case: rows not a multiple of the tile and dim < 128
    # (exercises Pallas's masked last block; no wrapper-side padding copy).
    x2 = jax.random.normal(jax.random.PRNGKey(1), (3, 5, 64), dtype=jnp.float32)
    out2 = jax.block_until_ready(scale_norm(x2, g))
    ref2 = scale_norm_ref(x2, g)
    assert out2.shape == x2.shape
    assert jnp.allclose(out2, ref2, atol=2e-5, rtol=1e-5), "mismatch vs reference (ragged)"

    # bf16 case: exercises the 16-row sublane multiple and the dtype-native
    # output multiply (sum-of-squares still accumulated in f32).
    x3 = jax.random.normal(jax.random.PRNGKey(2), (2, 16, 128), dtype=jnp.bfloat16)
    out3 = jax.block_until_ready(scale_norm(x3, g))
    ref3 = scale_norm_ref(x3, g)
    assert out3.shape == x3.shape
    assert jnp.allclose(out3.astype(jnp.float32), ref3.astype(jnp.float32),
                        atol=3e-2, rtol=3e-2), "mismatch vs reference (bf16)"

    print("KERNEL_OK")
</pallas_src>

<mosaic_0001>
module attributes {stable_mosaic.version = 11 : i64} {
  func.func @_scalenorm_kernel(%arg0: i32, %arg1: memref<1xf32, #tpu.memory_space<smem>>, %arg2: memref<16x128xf32, #tpu.memory_space<vmem>>, %arg3: memref<16x128xf32, #tpu.memory_space<vmem>>) attributes {dimension_semantics = [#tpu.dimension_semantics<parallel>], iteration_bounds = array<i64: 1>, scalar_prefetch = 0 : i64, scratch_operands = 0 : i64, tpu.core_type = #tpu.core_type<tc>, window_params = [{transform_indices = @transform_0, window_bounds = array<i64: 1>}, {transform_indices = @transform_1, window_bounds = array<i64: 16, 128>}, {transform_indices = @transform_2, window_bounds = array<i64: 16, 128>}]} {
    %c0 = arith.constant 0 : index
    %c0_0 = arith.constant 0 : index
    %0 = vector.load %arg2[%c0, %c0_0] : memref<16x128xf32, #tpu.memory_space<vmem>>, vector<16x128xf32>
    %1 = arith.mulf %0, %0 : vector<16x128xf32>
    %cst = arith.constant dense<0.000000e+00> : vector<16xf32>
    %2 = vector.multi_reduction <add>, %1, %cst [1] : vector<16x128xf32> to vector<16xf32>
    %3 = vector.shape_cast %2 : vector<16xf32> to vector<16x1xf32>
    %4 = math.rsqrt %3 : vector<16x1xf32>
    %cst_1 = arith.constant 11.3137083 : f32
    %5 = vector.broadcast %cst_1 : f32 to vector<16x1xf32>
    %6 = arith.mulf %4, %5 : vector<16x1xf32>
    %cst_2 = arith.constant 1.000000e+05 : f32
    %7 = vector.broadcast %cst_2 : f32 to vector<16x1xf32>
    %8 = arith.minimumf %6, %7 : vector<16x1xf32>
    %c0_3 = arith.constant 0 : index
    %9 = memref.load %arg1[%c0_3] : memref<1xf32, #tpu.memory_space<smem>>
    %10 = vector.broadcast %9 : f32 to vector<16x1xf32>
    %11 = arith.mulf %8, %10 : vector<16x1xf32>
    %c0_4 = arith.constant 0 : index
    %c0_5 = arith.constant 0 : index
    %12 = vector.load %arg2[%c0_4, %c0_5] : memref<16x128xf32, #tpu.memory_space<vmem>>, vector<16x128xf32>
    %13 = vector.broadcast %11 : vector<16x1xf32> to vector<16x128xf32>
    %14 = arith.mulf %12, %13 : vector<16x128xf32>
    %c0_6 = arith.constant 0 : index
    %c0_7 = arith.constant 0 : index
    %15 = vector.load %arg3[%c0_6, %c0_7] : memref<16x128xf32, #tpu.memory_space<vmem>>, vector<16x128xf32>
    tpu.vector_store %arg3[%c0_6, %c0_7], %14 {strides = array<i32>} : memref<16x128xf32, #tpu.memory_space<vmem>>, vector<16x128xf32>,
    return
  }
  func.func @transform_0(%arg0: i32) -> i32 {
    %c0_i32 = arith.constant 0 : i32
    %c0_i32_0 = arith.constant 0 : i32
    return %c0_i32 : i32
  }
  func.func @transform_1(%arg0: i32) -> (i32, i32) {
    %c0_i32 = arith.constant 0 : i32
    %c0_i32_0 = arith.constant 0 : i32
    return %arg0, %c0_i32 : i32, i32
  }
  func.func @transform_2(%arg0: i32) -> (i32, i32) {
    %c0_i32 = arith.constant 0 : i32
    %c0_i32_0 = arith.constant 0 : i32
    return %arg0, %c0_i32 : i32, i32
  }
}

</mosaic_0001>

<llo_original>
// kernel: tpu_custom_call.1
$region0: #{tpu_custom_call.1}
  #allocation0 [shape = 'u32[]', space=smem, size = 0x4, offset = 0x4, fixed_abs, tag = 'smem constant byte address 0x4 - core index']
  #allocation1 [shape = 'u32[144,128]{1,0:T(1,128)}', space=vmem, size = 0x12000, scoped, tag = 'internal scratch']
  #allocation2 [shape = 'f32[1]{0:T(128)S(6)}', space=smem, size = 0x200, scoped, tag = 'scoped memory for tpu_custom_call.1']
  %s0 = inlined_call_operand.<no memory space> [shape: f32[1], index: 0, kind: input, shape index: {}]
  %s1 = inlined_call_operand.hbm [shape: f32[16,128], index: 1, kind: input, shape index: {}]
  %s2 = inlined_call_operand.hbm [shape: f32[16,128], index: 2, kind: output, shape index: {}]
  %s3 = sld [smem:[#allocation0]]
  $region22: #{tpu_custom_call.1} parent=0
    _
  %s5 = ssub.s32 1, %s3
  %s6 = scalar_select 0, %s5, %s3
  %7 = sst [smem:[#allocation2]] %s0
  $region1: #{tpu_custom_call.1} parent=0
    #allocation3 [shape = 'u8[8192]{0}', space=vmem, size = 0x2000, scoped, tag = 'input window, operand 1, single buffered']
    #allocation4 [shape = 's32[1]{0}', space=sflag, size = 0x4, scoped, tag = 'scoped memory for tpu_custom_call.1']
    #allocation5 [shape = 's32[1]{0}', space=sflag, size = 0x4, scoped, tag = 'scoped memory for tpu_custom_call.1']
    #allocation6 [shape = 'u8[8192]{0}', space=vmem, size = 0x2000, scoped, tag = 'output window, operand 0, single buffered']
    %8 = vsyncpa [#allocation4], 0
    %9 = vsyncpa [#allocation5], 0
    // Predicated region
    $region2: #{tpu_custom_call.1} parent=1 // pred_check
      _
    $region3: #{tpu_custom_call.1} parent=1 // pred_check_branch
      %11 = sbr.rel (0) target = $region5
    $region4: #{tpu_custom_call.1} parent=1 // pred_region
      _
    $region5: #{tpu_custom_call.1} parent=1 // pred_fallthru
      _
    // Predicated region
    $region6: #{tpu_custom_call.1} parent=1 // pred_check
      _
    $region7: #{tpu_custom_call.1} parent=1 // pred_check_branch
      %13 = sbr.rel (0) target = $region9
    $region8: #{tpu_custom_call.1} parent=1 // pred_region
      %s15 = ssub.s32 256, 256
      %16 = vsyncadd [#allocation4], %s15
      %s17 = sshll.u32 [#allocation3], 4
      %s18 = int_to_ptr.vmem [resolvable:$true] %s17
      %23 = dma.hbm_to_vmem [thread:$0]  %s1, 256, %s18, [#allocation4], 128, 128, 8
    $region9: #{tpu_custom_call.1} parent=1 // pred_fallthru
      _
    // Predicated region
    $region10: #{tpu_custom_call.1} parent=1 // pred_check
      _
    $region11: #{tpu_custom_call.1} parent=1 // pred_check_branch
      %25 = sbr.rel (0) target = $region13
    $region12: #{tpu_custom_call.1} parent=1 // pred_region
      %26 = dma.done [#allocation4], 256
    $region13: #{tpu_custom_call.1} parent=1 // pred_fallthru
      _
    %v27 = vld [vmem:[#allocation3] sm:$0xff]
    %v28 = vld [vmem:[#allocation3 + $0x8] sm:$0xff]
    %v29 = vmul.f32 %v27, %v27
    %v30 = vmul.f32 %v28, %v28
    %31 = vadd.xlane.f32.xlu0 %v29
    %v32 = vpop.xlane.xlu0 %31
    %33 = vadd.xlane.f32.xlu0 %v30
    %v34 = vpop.xlane.xlu0 %33
    %v35 = vrsqrt.pop %v32
    %v36 = vrsqrt.pop %v34
    %v37 = vmul.f32 %v35, 11.313708
    %v38 = vmul.f32 %v36, 11.313708
    %v39 = vmin.f32 %v37, 100000.0
    %v40 = vmin.f32 %v38, 100000.0
    %s41 = sld [smem:[#allocation2]]
    %v42 = vstv %s41
    %v43 = vmul.f32 %v39, %v42
    %v44 = vmul.f32 %v40, %v42
    %v45 = vmul.f32 %v27, %v43
    %v46 = vmul.f32 %v28, %v44
    %47 = vst [vmem:[#allocation6] sm:$0xff] %v45
    %48 = vst [vmem:[#allocation6 + $0x8] sm:$0xff] %v46
    // Predicated region
    $region14: #{tpu_custom_call.1} parent=1 // pred_check
      _
    $region15: #{tpu_custom_call.1} parent=1 // pred_check_branch
      %50 = sbr.rel (0) target = $region17
    $region16: #{tpu_custom_call.1} parent=1 // pred_region
      %s52 = ssub.s32 256, 256
      %53 = vsyncadd [#allocation5], %s52
      %s54 = sshll.u32 [#allocation6], 4
      %s55 = int_to_ptr.vmem [resolvable:$true] %s54
      %60 = dma.vmem_to_hbm [thread:$0]  %s55, 256, %s2, [#allocation5], 128, 128, 8
    $region17: #{tpu_custom_call.1} parent=1 // pred_fallthru
      _
    // Predicated region
    $region18: #{tpu_custom_call.1} parent=1 // pred_check
      _
    $region19: #{tpu_custom_call.1} parent=1 // pred_check_branch
      %62 = sbr.rel (0) target = $region21
    $region20: #{tpu_custom_call.1} parent=1 // pred_region
      %63 = dma.done [#allocation5], 256
    $region21: #{tpu_custom_call.1} parent=1 // pred_fallthru
      _
    %64 = vsyncpa [#allocation4], 1
    %65 = vsyncpa [#allocation5], 1

</llo_original>
